<compile_context>
chip_gen: v7x
topology: tpu7x:2x2x1
jax: 0.10.0
libtpu: 0.0.40
codegen_flags: <defaults>
</compile_context>

<pallas_src>
import jax
import jax.numpy as jnp
from jax.experimental import pallas as pl
from jax.experimental.pallas import tpu as pltpu


INPUT_DIM = 4
HIDDEN_DIM = 32
GATE_DIM = 4 * HIDDEN_DIM       # 128: i, f, g, o (PyTorch gate order)
OUT_DIM = 4
OUT_PAD = 128                   # lane-dense padded output width

# Packed parameter slab layout (rows, all blocks start on an 8-row boundary):
ROW_WIH = 0                     # rows 0:4    W_ih^T            (D, 4H)
ROW_BIAS = 4                    # row  4      b_ih + b_hh       (4H,)
ROW_WHH = 8                     # rows 8:40   W_hh^T            (H, 4H)
ROW_WFC = 40                    # rows 40:72  W_fc^T, 0-padded  (H, OUT_PAD)
ROW_BFC = 72                    # row  72     b_fc, -1e9-padded (OUT_PAD,)
SLAB_ROWS = 80                  # padded to a multiple of 8 sublanes


def meta_learner_kernel(x_ref, p_ref, out_ref):
    """Single-layer LSTM over time, take final h, Linear, softmax (padded lanes)."""
    x = x_ref[...]                                   # (B, T, D) float32
    B, T, D = x.shape
    H = HIDDEN_DIM

    # ---- Hoisted input projection (+ combined bias) for ALL timesteps -------
    # Computed on the VPU as D broadcast-FMAs (no MXU fill latency, no
    # transpose/reshape of x).  xp[b, t, :] = b_ih + b_hh + x[b, t, :] @ W_ih^T
    xp = p_ref[ROW_BIAS:ROW_BIAS + 1, :]             # (1, 4H) -> broadcasts
    for k in range(D):
        xp = xp + x[:, :, k:k + 1] * p_ref[ROW_WIH + k:ROW_WIH + k + 1, :]
    # xp: (B, T, 4H); independent of h, so off the recurrence critical path.

    whh = p_ref[ROW_WHH:ROW_WHH + H, :]              # (H, 4H), read once

    h = jnp.zeros((B, H), jnp.float32)
    c = jnp.zeros((B, H), jnp.float32)

    # ---- Sequential LSTM recurrence (fully unrolled; T small and static) ----
    for t in range(T):
        xg = xp[:, t, :]                             # (B, 4H)
        if t == 0:
            gates = xg                               # h0 == 0: skip the matmul
        else:
            gates = xg + jnp.dot(h, whh, preferred_element_type=jnp.float32)
        s = jax.nn.sigmoid(gates)                    # full-width: 1 EUP vreg pass
        g_g = jnp.tanh(gates[:, 2 * H:3 * H])        # only the g gate needs tanh
        i_g = s[:, 0 * H:1 * H]
        f_g = s[:, 1 * H:2 * H]
        o_g = s[:, 3 * H:4 * H]
        c = i_g * g_g if t == 0 else f_g * c + i_g * g_g
        h = o_g * jnp.tanh(c)

    # ---- Final linear on h_n, then softmax over the padded 128 lanes --------
    # Pad lanes have weight 0 and bias -1e9 => exp underflows to exactly 0, so
    # the softmax over the 4 real lanes matches torch.softmax(out, dim=1).
    wfc = p_ref[ROW_WFC:ROW_WFC + H, :]              # (H, OUT_PAD)
    bfc = p_ref[ROW_BFC:ROW_BFC + 1, :]              # (1, OUT_PAD)
    logits = jnp.dot(h, wfc, preferred_element_type=jnp.float32) + bfc
    m = jnp.max(logits, axis=-1, keepdims=True)
    e = jnp.exp(logits - m)
    denom = jnp.sum(e, axis=-1, keepdims=True)
    out_ref[...] = (e / denom).astype(out_ref.dtype)     # exact divide


@jax.jit
def meta_learner_forward(x, params_slab):
    """x: (B, T, D) batch-first (PyTorch layout) -> (B, OUT_DIM) softmax probs."""
    B = x.shape[0]
    vmem = pl.BlockSpec(memory_space=pltpu.MemorySpace.VMEM)
    out_padded = pl.pallas_call(
        meta_learner_kernel,
        out_shape=jax.ShapeDtypeStruct((B, OUT_PAD), jnp.float32),
        in_specs=[vmem, vmem],
        out_specs=vmem,
    )(x, params_slab)
    return out_padded[:, :OUT_DIM]


def init_params(key, input_dim=INPUT_DIM, hidden_dim=HIDDEN_DIM, out_dim=OUT_DIM):
    """PyTorch-style uniform(-1/sqrt(H), 1/sqrt(H)) init, packed into one slab.

    Returns (params_slab, raw) where raw holds the PyTorch-layout tensors for
    the pure-JAX reference check.
    """
    ks = jax.random.split(key, 6)
    bound = 1.0 / jnp.sqrt(hidden_dim)
    w_ih = jax.random.uniform(ks[0], (4 * hidden_dim, input_dim), jnp.float32, -bound, bound)
    w_hh = jax.random.uniform(ks[1], (4 * hidden_dim, hidden_dim), jnp.float32, -bound, bound)
    b_ih = jax.random.uniform(ks[2], (4 * hidden_dim,), jnp.float32, -bound, bound)
    b_hh = jax.random.uniform(ks[3], (4 * hidden_dim,), jnp.float32, -bound, bound)
    w_fc = jax.random.uniform(ks[4], (out_dim, hidden_dim), jnp.float32, -bound, bound)
    b_fc = jax.random.uniform(ks[5], (out_dim,), jnp.float32, -bound, bound)

    slab = jnp.zeros((SLAB_ROWS, GATE_DIM), jnp.float32)
    slab = slab.at[ROW_WIH:ROW_WIH + input_dim, :].set(w_ih.T)          # (D, 4H)
    slab = slab.at[ROW_BIAS, :].set(b_ih + b_hh)                        # (4H,)
    slab = slab.at[ROW_WHH:ROW_WHH + hidden_dim, :].set(w_hh.T)         # (H, 4H)
    slab = slab.at[ROW_WFC:ROW_WFC + hidden_dim, :out_dim].set(w_fc.T)  # zero-padded lanes
    bfc_pad = jnp.full((OUT_PAD,), -1e9, jnp.float32).at[:out_dim].set(b_fc)
    slab = slab.at[ROW_BFC, :].set(bfc_pad)

    raw = (w_ih, w_hh, b_ih, b_hh, w_fc, b_fc)
    return slab, raw


def reference_forward(x, raw):
    """Pure-JAX reference matching torch semantics (for correctness check)."""
    w_ih, w_hh, b_ih, b_hh, w_fc, b_fc = raw
    B, T, D = x.shape
    H = w_hh.shape[1]
    hp = jax.lax.Precision.HIGHEST
    h = jnp.zeros((B, H), jnp.float32)
    c = jnp.zeros((B, H), jnp.float32)
    for t in range(T):
        gates = (jnp.dot(x[:, t, :], w_ih.T, precision=hp) + b_ih
                 + jnp.dot(h, w_hh.T, precision=hp) + b_hh)
        i = jax.nn.sigmoid(gates[:, 0 * H:1 * H])
        f = jax.nn.sigmoid(gates[:, 1 * H:2 * H])
        g = jnp.tanh(gates[:, 2 * H:3 * H])
        o = jax.nn.sigmoid(gates[:, 3 * H:4 * H])
        c = f * c + i * g
        h = o * jnp.tanh(c)
    logits = jnp.dot(h, w_fc.T, precision=hp) + b_fc
    return jax.nn.softmax(logits, axis=1)


if __name__ == "__main__":
    key = jax.random.PRNGKey(0)
    k_x, k_p = jax.random.split(key)

    B, T, D = 2, 8, INPUT_DIM
    x = jax.random.normal(k_x, (B, T, D), jnp.float32)

    params_slab, raw = init_params(k_p)

    out = meta_learner_forward(x, params_slab)
    out = jax.block_until_ready(out)

    assert out.shape == (B, OUT_DIM)
    # Exact softmax normalization (exact divide in-kernel).
    assert jnp.allclose(jnp.sum(out, axis=1), 1.0, atol=1e-5)
    assert bool(jnp.all(out > 0.0)) and bool(jnp.all(out < 1.0))
    # Match the pure-JAX / PyTorch-semantics reference.
    ref = reference_forward(x, raw)
    assert jnp.allclose(out, ref, atol=1e-4, rtol=1e-4)

    print("KERNEL_OK")
</pallas_src>

<mosaic_0001>
module attributes {stable_mosaic.version = 11 : i64} {
  func.func @meta_learner_kernel(%arg0: memref<2x8x4xf32, #tpu.memory_space<vmem>>, %arg1: memref<80x128xf32, #tpu.memory_space<vmem>>, %arg2: memref<2x128xf32, #tpu.memory_space<vmem>>) attributes {dimension_semantics = [], scalar_prefetch = 0 : i64, scratch_operands = 0 : i64, tpu.core_type = #tpu.core_type<tc>} {
    %c0 = arith.constant 0 : index
    %c0_0 = arith.constant 0 : index
    %c0_1 = arith.constant 0 : index
    %0 = vector.load %arg0[%c0, %c0_0, %c0_1] : memref<2x8x4xf32, #tpu.memory_space<vmem>>, vector<2x8x4xf32>
    %c4 = arith.constant 4 : index
    %c0_2 = arith.constant 0 : index
    %1 = vector.load %arg1[%c4, %c0_2] : memref<80x128xf32, #tpu.memory_space<vmem>>, vector<1x128xf32>
    %2 = vector.extract_strided_slice %0 {offsets = [0, 0, 0], sizes = [2, 8, 1], strides = [1, 1, 1]} : vector<2x8x4xf32> to vector<2x8x1xf32>
    %c0_3 = arith.constant 0 : index
    %c0_4 = arith.constant 0 : index
    %3 = vector.load %arg1[%c0_3, %c0_4] : memref<80x128xf32, #tpu.memory_space<vmem>>, vector<1x128xf32>
    %4 = vector.shape_cast %3 : vector<1x128xf32> to vector<1x1x128xf32>
    %5 = vector.broadcast %2 : vector<2x8x1xf32> to vector<2x8x128xf32>
    %6 = vector.broadcast %4 : vector<1x1x128xf32> to vector<2x8x128xf32>
    %7 = arith.mulf %5, %6 : vector<2x8x128xf32>
    %8 = vector.shape_cast %1 : vector<1x128xf32> to vector<1x1x128xf32>
    %9 = vector.broadcast %8 : vector<1x1x128xf32> to vector<2x8x128xf32>
    %10 = arith.addf %9, %7 : vector<2x8x128xf32>
    %11 = vector.extract_strided_slice %0 {offsets = [0, 0, 1], sizes = [2, 8, 1], strides = [1, 1, 1]} : vector<2x8x4xf32> to vector<2x8x1xf32>
    %c1 = arith.constant 1 : index
    %c0_5 = arith.constant 0 : index
    %12 = vector.load %arg1[%c1, %c0_5] : memref<80x128xf32, #tpu.memory_space<vmem>>, vector<1x128xf32>
    %13 = vector.shape_cast %12 : vector<1x128xf32> to vector<1x1x128xf32>
    %14 = vector.broadcast %11 : vector<2x8x1xf32> to vector<2x8x128xf32>
    %15 = vector.broadcast %13 : vector<1x1x128xf32> to vector<2x8x128xf32>
    %16 = arith.mulf %14, %15 : vector<2x8x128xf32>
    %17 = arith.addf %10, %16 : vector<2x8x128xf32>
    %18 = vector.extract_strided_slice %0 {offsets = [0, 0, 2], sizes = [2, 8, 1], strides = [1, 1, 1]} : vector<2x8x4xf32> to vector<2x8x1xf32>
    %c2 = arith.constant 2 : index
    %c0_6 = arith.constant 0 : index
    %19 = vector.load %arg1[%c2, %c0_6] : memref<80x128xf32, #tpu.memory_space<vmem>>, vector<1x128xf32>
    %20 = vector.shape_cast %19 : vector<1x128xf32> to vector<1x1x128xf32>
    %21 = vector.broadcast %18 : vector<2x8x1xf32> to vector<2x8x128xf32>
    %22 = vector.broadcast %20 : vector<1x1x128xf32> to vector<2x8x128xf32>
    %23 = arith.mulf %21, %22 : vector<2x8x128xf32>
    %24 = arith.addf %17, %23 : vector<2x8x128xf32>
    %25 = vector.extract_strided_slice %0 {offsets = [0, 0, 3], sizes = [2, 8, 1], strides = [1, 1, 1]} : vector<2x8x4xf32> to vector<2x8x1xf32>
    %c3 = arith.constant 3 : index
    %c0_7 = arith.constant 0 : index
    %26 = vector.load %arg1[%c3, %c0_7] : memref<80x128xf32, #tpu.memory_space<vmem>>, vector<1x128xf32>
    %27 = vector.shape_cast %26 : vector<1x128xf32> to vector<1x1x128xf32>
    %28 = vector.broadcast %25 : vector<2x8x1xf32> to vector<2x8x128xf32>
    %29 = vector.broadcast %27 : vector<1x1x128xf32> to vector<2x8x128xf32>
    %30 = arith.mulf %28, %29 : vector<2x8x128xf32>
    %31 = arith.addf %24, %30 : vector<2x8x128xf32>
    %c8 = arith.constant 8 : index
    %c0_8 = arith.constant 0 : index
    %32 = vector.load %arg1[%c8, %c0_8] : memref<80x128xf32, #tpu.memory_space<vmem>>, vector<32x128xf32>
    %33 = vector.extract_strided_slice %31 {offsets = [0, 0, 0], sizes = [2, 1, 128], strides = [1, 1, 1]} : vector<2x8x128xf32> to vector<2x1x128xf32>
    %34 = vector.shape_cast %33 : vector<2x1x128xf32> to vector<2x128xf32>
    %35 = arith.negf %34 : vector<2x128xf32>
    %36 = math.exp %35 : vector<2x128xf32>
    %cst = arith.constant 1.000000e+00 : f32
    %37 = vector.broadcast %cst : f32 to vector<2x128xf32>
    %38 = arith.addf %37, %36 : vector<2x128xf32>
    %39 = arith.divf %37, %38 : vector<2x128xf32>
    %40 = vector.extract_strided_slice %34 {offsets = [0, 64], sizes = [2, 32], strides = [1, 1]} : vector<2x128xf32> to vector<2x32xf32>
    %41 = math.tanh %40 : vector<2x32xf32>
    %42 = vector.extract_strided_slice %39 {offsets = [0, 0], sizes = [2, 32], strides = [1, 1]} : vector<2x128xf32> to vector<2x32xf32>
    %43 = vector.extract_strided_slice %39 {offsets = [0, 96], sizes = [2, 32], strides = [1, 1]} : vector<2x128xf32> to vector<2x32xf32>
    %44 = arith.mulf %42, %41 : vector<2x32xf32>
    %45 = math.tanh %44 : vector<2x32xf32>
    %46 = arith.mulf %43, %45 : vector<2x32xf32>
    %47 = vector.extract_strided_slice %31 {offsets = [0, 1, 0], sizes = [2, 1, 128], strides = [1, 1, 1]} : vector<2x8x128xf32> to vector<2x1x128xf32>
    %48 = vector.shape_cast %47 : vector<2x1x128xf32> to vector<2x128xf32>
    %cst_9 = arith.constant dense<0.000000e+00> : vector<2x128xf32>
    %49 = tpu.matmul %46, %32, %cst_9 {dimension_numbers = #tpu.dot_dimension_numbers<[1], [0], [0], [1], [0, 0, 1, 1], [], []>} : vector<2x32xf32>, vector<32x128xf32>, vector<2x128xf32> -> vector<2x128xf32>
    %50 = arith.addf %48, %49 : vector<2x128xf32>
    %51 = arith.negf %50 : vector<2x128xf32>
    %52 = math.exp %51 : vector<2x128xf32>
    %cst_10 = arith.constant 1.000000e+00 : f32
    %53 = vector.broadcast %cst_10 : f32 to vector<2x128xf32>
    %54 = arith.addf %53, %52 : vector<2x128xf32>
    %55 = arith.divf %53, %54 : vector<2x128xf32>
    %56 = vector.extract_strided_slice %50 {offsets = [0, 64], sizes = [2, 32], strides = [1, 1]} : vector<2x128xf32> to vector<2x32xf32>
    %57 = math.tanh %56 : vector<2x32xf32>
    %58 = vector.extract_strided_slice %55 {offsets = [0, 0], sizes = [2, 32], strides = [1, 1]} : vector<2x128xf32> to vector<2x32xf32>
    %59 = vector.extract_strided_slice %55 {offsets = [0, 32], sizes = [2, 32], strides = [1, 1]} : vector<2x128xf32> to vector<2x32xf32>
    %60 = vector.extract_strided_slice %55 {offsets = [0, 96], sizes = [2, 32], strides = [1, 1]} : vector<2x128xf32> to vector<2x32xf32>
    %61 = arith.mulf %59, %44 : vector<2x32xf32>
    %62 = arith.mulf %58, %57 : vector<2x32xf32>
    %63 = arith.addf %61, %62 : vector<2x32xf32>
    %64 = math.tanh %63 : vector<2x32xf32>
    %65 = arith.mulf %60, %64 : vector<2x32xf32>
    %66 = vector.extract_strided_slice %31 {offsets = [0, 2, 0], sizes = [2, 1, 128], strides = [1, 1, 1]} : vector<2x8x128xf32> to vector<2x1x128xf32>
    %67 = vector.shape_cast %66 : vector<2x1x128xf32> to vector<2x128xf32>
    %cst_11 = arith.constant dense<0.000000e+00> : vector<2x128xf32>
    %68 = tpu.matmul %65, %32, %cst_11 {dimension_numbers = #tpu.dot_dimension_numbers<[1], [0], [0], [1], [0, 0, 1, 1], [], []>} : vector<2x32xf32>, vector<32x128xf32>, vector<2x128xf32> -> vector<2x128xf32>
    %69 = arith.addf %67, %68 : vector<2x128xf32>
    %70 = arith.negf %69 : vector<2x128xf32>
    %71 = math.exp %70 : vector<2x128xf32>
    %cst_12 = arith.constant 1.000000e+00 : f32
    %72 = vector.broadcast %cst_12 : f32 to vector<2x128xf32>
    %73 = arith.addf %72, %71 : vector<2x128xf32>
    %74 = arith.divf %72, %73 : vector<2x128xf32>
    %75 = vector.extract_strided_slice %69 {offsets = [0, 64], sizes = [2, 32], strides = [1, 1]} : vector<2x128xf32> to vector<2x32xf32>
    %76 = math.tanh %75 : vector<2x32xf32>
    %77 = vector.extract_strided_slice %74 {offsets = [0, 0], sizes = [2, 32], strides = [1, 1]} : vector<2x128xf32> to vector<2x32xf32>
    %78 = vector.extract_strided_slice %74 {offsets = [0, 32], sizes = [2, 32], strides = [1, 1]} : vector<2x128xf32> to vector<2x32xf32>
    %79 = vector.extract_strided_slice %74 {offsets = [0, 96], sizes = [2, 32], strides = [1, 1]} : vector<2x128xf32> to vector<2x32xf32>
    %80 = arith.mulf %78, %63 : vector<2x32xf32>
    %81 = arith.mulf %77, %76 : vector<2x32xf32>
    %82 = arith.addf %80, %81 : vector<2x32xf32>
    %83 = math.tanh %82 : vector<2x32xf32>
    %84 = arith.mulf %79, %83 : vector<2x32xf32>
    %85 = vector.extract_strided_slice %31 {offsets = [0, 3, 0], sizes = [2, 1, 128], strides = [1, 1, 1]} : vector<2x8x128xf32> to vector<2x1x128xf32>
    %86 = vector.shape_cast %85 : vector<2x1x128xf32> to vector<2x128xf32>
    %cst_13 = arith.constant dense<0.000000e+00> : vector<2x128xf32>
    %87 = tpu.matmul %84, %32, %cst_13 {dimension_numbers = #tpu.dot_dimension_numbers<[1], [0], [0], [1], [0, 0, 1, 1], [], []>} : vector<2x32xf32>, vector<32x128xf32>, vector<2x128xf32> -> vector<2x128xf32>
    %88 = arith.addf %86, %87 : vector<2x128xf32>
    %89 = arith.negf %88 : vector<2x128xf32>
    %90 = math.exp %89 : vector<2x128xf32>
    %cst_14 = arith.constant 1.000000e+00 : f32
    %91 = vector.broadcast %cst_14 : f32 to vector<2x128xf32>
    %92 = arith.addf %91, %90 : vector<2x128xf32>
    %93 = arith.divf %91, %92 : vector<2x128xf32>
    %94 = vector.extract_strided_slice %88 {offsets = [0, 64], sizes = [2, 32], strides = [1, 1]} : vector<2x128xf32> to vector<2x32xf32>
    %95 = math.tanh %94 : vector<2x32xf32>
    %96 = vector.extract_strided_slice %93 {offsets = [0, 0], sizes = [2, 32], strides = [1, 1]} : vector<2x128xf32> to vector<2x32xf32>
    %97 = vector.extract_strided_slice %93 {offsets = [0, 32], sizes = [2, 32], strides = [1, 1]} : vector<2x128xf32> to vector<2x32xf32>
    %98 = vector.extract_strided_slice %93 {offsets = [0, 96], sizes = [2, 32], strides = [1, 1]} : vector<2x128xf32> to vector<2x32xf32>
    %99 = arith.mulf %97, %82 : vector<2x32xf32>
    %100 = arith.mulf %96, %95 : vector<2x32xf32>
    %101 = arith.addf %99, %100 : vector<2x32xf32>
    %102 = math.tanh %101 : vector<2x32xf32>
    %103 = arith.mulf %98, %102 : vector<2x32xf32>
    %104 = vector.extract_strided_slice %31 {offsets = [0, 4, 0], sizes = [2, 1, 128], strides = [1, 1, 1]} : vector<2x8x128xf32> to vector<2x1x128xf32>
    %105 = vector.shape_cast %104 : vector<2x1x128xf32> to vector<2x128xf32>
    %cst_15 = arith.constant dense<0.000000e+00> : vector<2x128xf32>
    %106 = tpu.matmul %103, %32, %cst_15 {dimension_numbers = #tpu.dot_dimension_numbers<[1], [0], [0], [1], [0, 0, 1, 1], [], []>} : vector<2x32xf32>, vector<32x128xf32>, vector<2x128xf32> -> vector<2x128xf32>
    %107 = arith.addf %105, %106 : vector<2x128xf32>
    %108 = arith.negf %107 : vector<2x128xf32>
    %109 = math.exp %108 : vector<2x128xf32>
    %cst_16 = arith.constant 1.000000e+00 : f32
    %110 = vector.broadcast %cst_16 : f32 to vector<2x128xf32>
    %111 = arith.addf %110, %109 : vector<2x128xf32>
    %112 = arith.divf %110, %111 : vector<2x128xf32>
    %113 = vector.extract_strided_slice %107 {offsets = [0, 64], sizes = [2, 32], strides = [1, 1]} : vector<2x128xf32> to vector<2x32xf32>
    %114 = math.tanh %113 : vector<2x32xf32>
    %115 = vector.extract_strided_slice %112 {offsets = [0, 0], sizes = [2, 32], strides = [1, 1]} : vector<2x128xf32> to vector<2x32xf32>
    %116 = vector.extract_strided_slice %112 {offsets = [0, 32], sizes = [2, 32], strides = [1, 1]} : vector<2x128xf32> to vector<2x32xf32>
    %117 = vector.extract_strided_slice %112 {offsets = [0, 96], sizes = [2, 32], strides = [1, 1]} : vector<2x128xf32> to vector<2x32xf32>
    %118 = arith.mulf %116, %101 : vector<2x32xf32>
    %119 = arith.mulf %115, %114 : vector<2x32xf32>
    %120 = arith.addf %118, %119 : vector<2x32xf32>
    %121 = math.tanh %120 : vector<2x32xf32>
    %122 = arith.mulf %117, %121 : vector<2x32xf32>
    %123 = vector.extract_strided_slice %31 {offsets = [0, 5, 0], sizes = [2, 1, 128], strides = [1, 1, 1]} : vector<2x8x128xf32> to vector<2x1x128xf32>
    %124 = vector.shape_cast %123 : vector<2x1x128xf32> to vector<2x128xf32>
    %cst_17 = arith.constant dense<0.000000e+00> : vector<2x128xf32>
    %125 = tpu.matmul %122, %32, %cst_17 {dimension_numbers = #tpu.dot_dimension_numbers<[1], [0], [0], [1], [0, 0, 1, 1], [], []>} : vector<2x32xf32>, vector<32x128xf32>, vector<2x128xf32> -> vector<2x128xf32>
    %126 = arith.addf %124, %125 : vector<2x128xf32>
    %127 = arith.negf %126 : vector<2x128xf32>
    %128 = math.exp %127 : vector<2x128xf32>
    %cst_18 = arith.constant 1.000000e+00 : f32
    %129 = vector.broadcast %cst_18 : f32 to vector<2x128xf32>
    %130 = arith.addf %129, %128 : vector<2x128xf32>
    %131 = arith.divf %129, %130 : vector<2x128xf32>
    %132 = vector.extract_strided_slice %126 {offsets = [0, 64], sizes = [2, 32], strides = [1, 1]} : vector<2x128xf32> to vector<2x32xf32>
    %133 = math.tanh %132 : vector<2x32xf32>
    %134 = vector.extract_strided_slice %131 {offsets = [0, 0], sizes = [2, 32], strides = [1, 1]} : vector<2x128xf32> to vector<2x32xf32>
    %135 = vector.extract_strided_slice %131 {offsets = [0, 32], sizes = [2, 32], strides = [1, 1]} : vector<2x128xf32> to vector<2x32xf32>
    %136 = vector.extract_strided_slice %131 {offsets = [0, 96], sizes = [2, 32], strides = [1, 1]} : vector<2x128xf32> to vector<2x32xf32>
    %137 = arith.mulf %135, %120 : vector<2x32xf32>
    %138 = arith.mulf %134, %133 : vector<2x32xf32>
    %139 = arith.addf %137, %138 : vector<2x32xf32>
    %140 = math.tanh %139 : vector<2x32xf32>
    %141 = arith.mulf %136, %140 : vector<2x32xf32>
    %142 = vector.extract_strided_slice %31 {offsets = [0, 6, 0], sizes = [2, 1, 128], strides = [1, 1, 1]} : vector<2x8x128xf32> to vector<2x1x128xf32>
    %143 = vector.shape_cast %142 : vector<2x1x128xf32> to vector<2x128xf32>
    %cst_19 = arith.constant dense<0.000000e+00> : vector<2x128xf32>
    %144 = tpu.matmul %141, %32, %cst_19 {dimension_numbers = #tpu.dot_dimension_numbers<[1], [0], [0], [1], [0, 0, 1, 1], [], []>} : vector<2x32xf32>, vector<32x128xf32>, vector<2x128xf32> -> vector<2x128xf32>
    %145 = arith.addf %143, %144 : vector<2x128xf32>
    %146 = arith.negf %145 : vector<2x128xf32>
    %147 = math.exp %146 : vector<2x128xf32>
    %cst_20 = arith.constant 1.000000e+00 : f32
    %148 = vector.broadcast %cst_20 : f32 to vector<2x128xf32>
    %149 = arith.addf %148, %147 : vector<2x128xf32>
    %150 = arith.divf %148, %149 : vector<2x128xf32>
    %151 = vector.extract_strided_slice %145 {offsets = [0, 64], sizes = [2, 32], strides = [1, 1]} : vector<2x128xf32> to vector<2x32xf32>
    %152 = math.tanh %151 : vector<2x32xf32>
    %153 = vector.extract_strided_slice %150 {offsets = [0, 0], sizes = [2, 32], strides = [1, 1]} : vector<2x128xf32> to vector<2x32xf32>
    %154 = vector.extract_strided_slice %150 {offsets = [0, 32], sizes = [2, 32], strides = [1, 1]} : vector<2x128xf32> to vector<2x32xf32>
    %155 = vector.extract_strided_slice %150 {offsets = [0, 96], sizes = [2, 32], strides = [1, 1]} : vector<2x128xf32> to vector<2x32xf32>
    %156 = arith.mulf %154, %139 : vector<2x32xf32>
    %157 = arith.mulf %153, %152 : vector<2x32xf32>
    %158 = arith.addf %156, %157 : vector<2x32xf32>
    %159 = math.tanh %158 : vector<2x32xf32>
    %160 = arith.mulf %155, %159 : vector<2x32xf32>
    %161 = vector.extract_strided_slice %31 {offsets = [0, 7, 0], sizes = [2, 1, 128], strides = [1, 1, 1]} : vector<2x8x128xf32> to vector<2x1x128xf32>
    %162 = vector.shape_cast %161 : vector<2x1x128xf32> to vector<2x128xf32>
    %cst_21 = arith.constant dense<0.000000e+00> : vector<2x128xf32>
    %163 = tpu.matmul %160, %32, %cst_21 {dimension_numbers = #tpu.dot_dimension_numbers<[1], [0], [0], [1], [0, 0, 1, 1], [], []>} : vector<2x32xf32>, vector<32x128xf32>, vector<2x128xf32> -> vector<2x128xf32>
    %164 = arith.addf %162, %163 : vector<2x128xf32>
    %165 = arith.negf %164 : vector<2x128xf32>
    %166 = math.exp %165 : vector<2x128xf32>
    %cst_22 = arith.constant 1.000000e+00 : f32
    %167 = vector.broadcast %cst_22 : f32 to vector<2x128xf32>
    %168 = arith.addf %167, %166 : vector<2x128xf32>
    %169 = arith.divf %167, %168 : vector<2x128xf32>
    %170 = vector.extract_strided_slice %164 {offsets = [0, 64], sizes = [2, 32], strides = [1, 1]} : vector<2x128xf32> to vector<2x32xf32>
    %171 = math.tanh %170 : vector<2x32xf32>
    %172 = vector.extract_strided_slice %169 {offsets = [0, 0], sizes = [2, 32], strides = [1, 1]} : vector<2x128xf32> to vector<2x32xf32>
    %173 = vector.extract_strided_slice %169 {offsets = [0, 32], sizes = [2, 32], strides = [1, 1]} : vector<2x128xf32> to vector<2x32xf32>
    %174 = vector.extract_strided_slice %169 {offsets = [0, 96], sizes = [2, 32], strides = [1, 1]} : vector<2x128xf32> to vector<2x32xf32>
    %175 = arith.mulf %173, %158 : vector<2x32xf32>
    %176 = arith.mulf %172, %171 : vector<2x32xf32>
    %177 = arith.addf %175, %176 : vector<2x32xf32>
    %178 = math.tanh %177 : vector<2x32xf32>
    %179 = arith.mulf %174, %178 : vector<2x32xf32>
    %c40 = arith.constant 40 : index
    %c0_23 = arith.constant 0 : index
    %180 = vector.load %arg1[%c40, %c0_23] : memref<80x128xf32, #tpu.memory_space<vmem>>, vector<32x128xf32>
    %c72 = arith.constant 72 : index
    %c0_24 = arith.constant 0 : index
    %181 = vector.load %arg1[%c72, %c0_24] : memref<80x128xf32, #tpu.memory_space<vmem>>, vector<1x128xf32>
    %cst_25 = arith.constant dense<0.000000e+00> : vector<2x128xf32>
    %182 = tpu.matmul %179, %180, %cst_25 {dimension_numbers = #tpu.dot_dimension_numbers<[1], [0], [0], [1], [0, 0, 1, 1], [], []>} : vector<2x32xf32>, vector<32x128xf32>, vector<2x128xf32> -> vector<2x128xf32>
    %183 = vector.broadcast %181 : vector<1x128xf32> to vector<2x128xf32>
    %184 = arith.addf %182, %183 : vector<2x128xf32>
    %cst_26 = arith.constant dense<0xFF800000> : vector<2xf32>
    %185 = vector.multi_reduction <maximumf>, %184, %cst_26 [1] : vector<2x128xf32> to vector<2xf32>
    %186 = vector.shape_cast %185 : vector<2xf32> to vector<2x1xf32>
    %187 = vector.broadcast %186 : vector<2x1xf32> to vector<2x128xf32>
    %188 = arith.subf %184, %187 : vector<2x128xf32>
    %189 = math.exp %188 : vector<2x128xf32>
    %cst_27 = arith.constant dense<0.000000e+00> : vector<2xf32>
    %190 = vector.multi_reduction <add>, %189, %cst_27 [1] : vector<2x128xf32> to vector<2xf32>
    %191 = vector.shape_cast %190 : vector<2xf32> to vector<2x1xf32>
    %192 = vector.broadcast %191 : vector<2x1xf32> to vector<2x128xf32>
    %193 = arith.divf %189, %192 : vector<2x128xf32>
    %c0_28 = arith.constant 0 : index
    %c0_29 = arith.constant 0 : index
    %194 = vector.load %arg2[%c0_28, %c0_29] : memref<2x128xf32, #tpu.memory_space<vmem>>, vector<2x128xf32>
    tpu.vector_store %arg2[%c0_28, %c0_29], %193 {strides = array<i32>} : memref<2x128xf32, #tpu.memory_space<vmem>>, vector<2x128xf32>,
    return
  }
}

</mosaic_0001>

<llo_original>
// kernel: meta_learner_forward.1
$region0: #{meta_learner_forward.1}
  #allocation0 [shape = 'u32[]', space=smem, size = 0x4, offset = 0x4, fixed_abs, tag = 'smem constant byte address 0x4 - core index']
  #allocation1 [shape = 'u32[144,128]{1,0:T(1,128)}', space=vmem, size = 0x12000, scoped, tag = 'internal scratch']
  %s0 = inlined_call_operand.vmem [shape: f32[2,8,4], index: 0, kind: input, shape index: {}]
  %s1 = inlined_call_operand.hbm [shape: f32[80,128], index: 1, kind: input, shape index: {}]
  %s2 = inlined_call_operand.hbm [shape: f32[2,128], index: 2, kind: output, shape index: {}]
  %s3 = sld [smem:[#allocation0]]
  $region22: #{meta_learner_forward.1} parent=0
    _
  %s5 = ssub.s32 1, %s3
  %s6 = scalar_select 0, %s5, %s3
  $region1: #{meta_learner_forward.1} parent=0
    #allocation2 [shape = 'u8[40960]{0}', space=vmem, size = 0xa000, scoped, tag = 'input window, operand 1, single buffered']
    #allocation3 [shape = 's32[1]{0}', space=sflag, size = 0x4, scoped, tag = 'scoped memory for meta_learner_forward.1']
    #allocation4 [shape = 's32[1]{0}', space=sflag, size = 0x4, scoped, tag = 'scoped memory for meta_learner_forward.1']
    #allocation5 [shape = 'u8[1024]{0}', space=vmem, size = 0x400, scoped, tag = 'output window, operand 0, single buffered']
    %7 = vsyncpa [#allocation3], 0
    %8 = vsyncpa [#allocation4], 0
    // Predicated region
    $region2: #{meta_learner_forward.1} parent=1 // pred_check
      _
    $region3: #{meta_learner_forward.1} parent=1 // pred_check_branch
      %10 = sbr.rel (0) target = $region5
    $region4: #{meta_learner_forward.1} parent=1 // pred_region
      _
    $region5: #{meta_learner_forward.1} parent=1 // pred_fallthru
      _
    // Predicated region
    $region6: #{meta_learner_forward.1} parent=1 // pred_check
      _
    $region7: #{meta_learner_forward.1} parent=1 // pred_check_branch
      %12 = sbr.rel (0) target = $region9
    $region8: #{meta_learner_forward.1} parent=1 // pred_region
      %s14 = ssub.s32 1280, 1280
      %15 = vsyncadd [#allocation3], %s14
      %s16 = sshll.u32 [#allocation2], 4
      %s17 = int_to_ptr.vmem [resolvable:$true] %s16
      %22 = dma.hbm_to_vmem [thread:$0]  %s1, 1280, %s17, [#allocation3], 128, 128, 8
    $region9: #{meta_learner_forward.1} parent=1 // pred_fallthru
      _
    // Predicated region
    $region10: #{meta_learner_forward.1} parent=1 // pred_check
      _
    $region11: #{meta_learner_forward.1} parent=1 // pred_check_branch
      %24 = sbr.rel (0) target = $region13
    $region12: #{meta_learner_forward.1} parent=1 // pred_region
      %25 = dma.done [#allocation3], 1280
    $region13: #{meta_learner_forward.1} parent=1 // pred_fallthru
      _
    %v26 = vld [vmem:[%s0] sm:$0xff]
    %v27 = vld [vmem:[%s0 + $0x8] sm:$0xff]
    %v28 = vld [vmem:[#allocation2 + $0x4] sm:$0x1]
    %v29 = vld [vmem:[#allocation2] sm:$0x1]
    %31 = vset.pattern.permute.xlu0 0
    %32 = vperm.xlu0 %31, %v26
    %v33 = vpop.permute.xlu0 %32
    %36 = vset.pattern.permute.xlu0 0
    %37 = vperm.xlu0 %36, %v27
    %v38 = vpop.permute.xlu0 %37
    %v40 = vlaneseq
    %v41 = vshrl.u32 %v40, 7
    %v42 = vsub.s32 0, %v41
    %v43 = vrot.slane %v29, %v42
    %v44 = vmul.f32 %v33, %v43
    %v45 = vmul.f32 %v38, %v43
    %v46 = vlaneseq
    %v47 = vshrl.u32 %v46, 7
    %v48 = vsub.s32 0, %v47
    %v49 = vrot.slane %v28, %v48
    %v50 = vadd.f32 %v49, %v44
    %v51 = vadd.f32 %v49, %v45
    %v52 = vld [vmem:[#allocation2 + $0x1] sm:$0x1]
    %53 = vset.pattern.permute.xlu0 1
    %54 = vperm.xlu0 %53, %v26
    %v55 = vpop.permute.xlu0 %54
    %57 = vset.pattern.permute.xlu0 1
    %58 = vperm.xlu0 %57, %v27
    %v59 = vpop.permute.xlu0 %58
    %v61 = vlaneseq
    %v62 = vshrl.u32 %v61, 7
    %v63 = vsub.s32 0, %v62
    %v64 = vrot.slane %v52, %v63
    %v65 = vmul.f32 %v55, %v64
    %v66 = vmul.f32 %v59, %v64
    %v67 = vadd.f32 %v50, %v65
    %v68 = vadd.f32 %v51, %v66
    %v69 = vld [vmem:[#allocation2 + $0x2] sm:$0x1]
    %70 = vset.pattern.permute.xlu0 2
    %71 = vperm.xlu0 %70, %v26
    %v72 = vpop.permute.xlu0 %71
    %74 = vset.pattern.permute.xlu0 2
    %75 = vperm.xlu0 %74, %v27
    %v76 = vpop.permute.xlu0 %75
    %v78 = vlaneseq
    %v79 = vshrl.u32 %v78, 7
    %v80 = vsub.s32 0, %v79
    %v81 = vrot.slane %v69, %v80
    %v82 = vmul.f32 %v72, %v81
    %v83 = vmul.f32 %v76, %v81
    %v84 = vadd.f32 %v67, %v82
    %v85 = vadd.f32 %v68, %v83
    %v86 = vld [vmem:[#allocation2 + $0x3] sm:$0x1]
    %87 = vset.pattern.permute.xlu0 3
    %88 = vperm.xlu0 %87, %v26
    %v89 = vpop.permute.xlu0 %88
    %91 = vset.pattern.permute.xlu0 3
    %92 = vperm.xlu0 %91, %v27
    %v93 = vpop.permute.xlu0 %92
    %v95 = vlaneseq
    %v96 = vshrl.u32 %v95, 7
    %v97 = vsub.s32 0, %v96
    %v98 = vrot.slane %v86, %v97
    %v99 = vmul.f32 %v89, %v98
    %v100 = vmul.f32 %v93, %v98
    %v101 = vadd.f32 %v84, %v99
    %v102 = vadd.f32 %v85, %v100
    %v103 = vld [vmem:[#allocation2 + $0x8] sm:$0xff]
    %v104 = vld [vmem:[#allocation2 + $0x10] sm:$0xff]
    %v105 = vld [vmem:[#allocation2 + $0x18] sm:$0xff]
    %v106 = vld [vmem:[#allocation2 + $0x20] sm:$0xff]
    %v107 = vxor.u32 %v101, 2147483648
    %v108 = vxor.u32 %v102, 2147483648
    %v109 = vmul.f32 %v107, 1.442695
    %v110 = vpow.pop %v109
    %v111 = vmul.f32 %v108, 1.442695
    %v112 = vpow.pop %v111
    %v113 = vadd.f32 %v110, 1.0
    %v114 = vadd.f32 %v112, 1.0
    %v115 = vrcp.pop %v113
    %v116 = vmul.f32 1.0, %v115
    %v117 = vrcp.pop %v114
    %v118 = vmul.f32 1.0, %v117
    %v119 = vtanh.pop %v101
    %v120 = vtanh.pop %v102
    %123 = vrot.lane.b32.xlu0 %v119, 64
    %v124 = vpop.permute.xlu0 %123
    %125 = vrot.lane.b32.xlu0 %v120, 64
    %v126 = vpop.permute.xlu0 %125
    %v129 = vmul.f32 %v116, %v124
    %v130 = vmul.f32 %v118, %v126
    %v131 = vtanh.pop %v129
    %v132 = vtanh.pop %v130
    %135 = vrot.lane.b32.xlu0 %v131, 96
    %v136 = vpop.permute.xlu0 %135
    %137 = vrot.lane.b32.xlu0 %v132, 96
    %v138 = vpop.permute.xlu0 %137
    %v141 = vmul.f32 %v116, %v136
    %v142 = vmul.f32 %v118, %v138
    %v145 = vrot.slane %v142, 7
    %vm146 = vcmask 1041409
    %v147 = vsel %vm146, %v145, %v141
    %148 = vrot.lane.b32.xlu0 %v147, 32
    %v149 = vpop.permute.xlu0 %148
    %vm150 = vcmask 261120
    %v151 = vsel %vm150, %v149, 0
    %153 = vmatprep.subr.mxu0 0.0
    %154 = vmatpush1.msra.mxu0 %v103
    %155 = vmatprep.subr.mxu0 0.0
    %156 = vmatpush1.msra.mxu0 %v104
    %157 = vmatprep.subr.mxu0 0.0
    %158 = vmatpush1.msra.mxu0 %v105
    %159 = vmatprep.subr.mxu0 0.0
    %160 = vmatpush1.msra.mxu0 %v106
    %161 = vmatprep.subr.mxu0 0.0
    %162 = vmatpush1.msra.mxu0 0.0
    %163 = vmatprep.subr.mxu0 0.0
    %164 = vmatpush1.msra.mxu0 0.0
    %165 = vmatprep.subr.mxu0 0.0
    %166 = vmatpush1.msra.mxu0 0.0
    %167 = vmatprep.subr.mxu0 0.0
    %168 = vmatpush1.msra.mxu0 0.0
    %169 = vmatprep.subr.mxu0 0.0
    %170 = vmatpush1.msra.mxu0 0.0
    %171 = vmatprep.subr.mxu0 0.0
    %172 = vmatpush1.msra.mxu0 0.0
    %173 = vmatprep.subr.mxu0 0.0
    %174 = vmatpush1.msra.mxu0 0.0
    %175 = vmatprep.subr.mxu0 0.0
    %176 = vmatpush1.msra.mxu0 0.0
    %177 = vmatprep.subr.mxu0 0.0
    %178 = vmatpush1.msra.mxu0 0.0
    %179 = vmatprep.subr.mxu0 0.0
    %180 = vmatpush1.msra.mxu0 0.0
    %181 = vmatprep.subr.mxu0 0.0
    %182 = vmatpush1.msra.mxu0 0.0
    %183 = vmatprep.subr.mxu0 0.0
    %184 = vmatpush1.msra.mxu0 0.0
    %185 = vmatprep.subr.mxu0 0.0
    %186 = vmatpush1.msra.mxu0 0.0
    %187 = vmatprep.subr.mxu0 0.0
    %188 = vmatpush1.msra.mxu0 0.0
    %189 = vmatprep.subr.mxu0 0.0
    %190 = vmatpush1.msra.mxu0 0.0
    %191 = vmatprep.subr.mxu0 0.0
    %192 = vmatpush1.msra.mxu0 0.0
    %193 = vmatprep.subr.mxu0 0.0
    %194 = vmatpush1.msra.mxu0 0.0
    %195 = vmatprep.subr.mxu0 0.0
    %196 = vmatpush1.msra.mxu0 0.0
    %197 = vmatprep.subr.mxu0 0.0
    %198 = vmatpush1.msra.mxu0 0.0
    %199 = vmatprep.subr.mxu0 0.0
    %200 = vmatpush1.msra.mxu0 0.0
    %201 = vmatprep.subr.mxu0 0.0
    %202 = vmatpush1.msra.mxu0 0.0
    %203 = vmatprep.subr.mxu0 0.0
    %204 = vmatpush1.msra.mxu0 0.0
    %205 = vmatprep.subr.mxu0 0.0
    %206 = vmatpush1.msra.mxu0 0.0
    %207 = vmatprep.subr.mxu0 0.0
    %208 = vmatpush1.msra.mxu0 0.0
    %209 = vmatprep.subr.mxu0 0.0
    %210 = vmatpush1.msra.mxu0 0.0
    %211 = vmatprep.subr.mxu0 0.0
    %212 = vmatpush1.msra.mxu0 0.0
    %213 = vmatprep.subr.mxu0 0.0
    %214 = vmatpush1.msra.mxu0 0.0
    %215 = vmatprep.subr.mxu0 0.0
    %216 = vmatpush1.msra.mxu0 0.0
    %217 = vmatprep.mubr.f32.mxu0 0.0
    %218 = vmatmul.mubr.f32.gmra.mrb[0].mxu0 %v151
    %v219 = vpop.f32.mrb[0].mxu0
    %v220 = vadd.f32 0.0, %v219
    %v221 = vpop.f32.mrb[0].mxu0
    %222 = vdwg.mxu0
    %v224 = vrot.slane %v220, 7
    %v227 = vadd.f32 %v101, %v224
    %v228 = vadd.f32 %v102, %v220
    %v229 = vxor.u32 %v227, 2147483648
    %v230 = vxor.u32 %v228, 2147483648
    %v231 = vmul.f32 %v229, 1.442695
    %v232 = vpow.pop %v231
    %v233 = vmul.f32 %v230, 1.442695
    %v234 = vpow.pop %v233
    %v235 = vadd.f32 %v232, 1.0
    %v236 = vadd.f32 %v234, 1.0
    %v237 = vrcp.pop %v235
    %v238 = vmul.f32 1.0, %v237
    %v239 = vrcp.pop %v236
    %v240 = vmul.f32 1.0, %v239
    %v241 = vtanh.pop %v227
    %v242 = vtanh.pop %v228
    %v245 = vrot.slane %v129, 7
    %v246 = vrot.slane %v130, 7
    %247 = vrot.lane.b32.xlu0 %v245, 32
    %v248 = vpop.permute.xlu0 %247
    %249 = vrot.lane.b32.xlu0 %v246, 32
    %v250 = vpop.permute.xlu0 %249
    %v253 = vmul.f32 %v238, %v248
    %v254 = vmul.f32 %v240, %v250
    %257 = vrot.lane.b32.xlu0 %v241, 64
    %v258 = vpop.permute.xlu0 %257
    %259 = vrot.lane.b32.xlu0 %v242, 64
    %v260 = vpop.permute.xlu0 %259
    %v263 = vmul.f32 %v238, %v258
    %v264 = vmul.f32 %v240, %v260
    %267 = vrot.lane.b32.xlu0 %v263, 32
    %v268 = vpop.permute.xlu0 %267
    %269 = vrot.lane.b32.xlu0 %v264, 32
    %v270 = vpop.permute.xlu0 %269
    %v273 = vadd.f32 %v253, %v268
    %v274 = vadd.f32 %v254, %v270
    %v275 = vtanh.pop %v273
    %v276 = vtanh.pop %v274
    %279 = vrot.lane.b32.xlu0 %v275, 64
    %v280 = vpop.permute.xlu0 %279
    %281 = vrot.lane.b32.xlu0 %v276, 64
    %v282 = vpop.permute.xlu0 %281
    %v285 = vmul.f32 %v238, %v280
    %v286 = vmul.f32 %v240, %v282
    %v289 = vrot.slane %v285, 1
    %v290 = vsel %vm146, %v286, %v289
    %291 = vrot.lane.b32.xlu0 %v290, 32
    %v292 = vpop.permute.xlu0 %291
    %v293 = vsel %vm150, %v292, 0
    %295 = vmatprep.subr.mxu0 0.0
    %296 = vmatpush1.msra.mxu0 %v103
    %297 = vmatprep.subr.mxu0 0.0
    %298 = vmatpush1.msra.mxu0 %v104
    %299 = vmatprep.subr.mxu0 0.0
    %300 = vmatpush1.msra.mxu0 %v105
    %301 = vmatprep.subr.mxu0 0.0
    %302 = vmatpush1.msra.mxu0 %v106
    %303 = vmatprep.subr.mxu0 0.0
    %304 = vmatpush1.msra.mxu0 0.0
    %305 = vmatprep.subr.mxu0 0.0
    %306 = vmatpush1.msra.mxu0 0.0
    %307 = vmatprep.subr.mxu0 0.0
    %308 = vmatpush1.msra.mxu0 0.0
    %309 = vmatprep.subr.mxu0 0.0
    %310 = vmatpush1.msra.mxu0 0.0
    %311 = vmatprep.subr.mxu0 0.0
    %312 = vmatpush1.msra.mxu0 0.0
    %313 = vmatprep.subr.mxu0 0.0
    %314 = vmatpush1.msra.mxu0 0.0
    %315 = vmatprep.subr.mxu0 0.0
    %316 = vmatpush1.msra.mxu0 0.0
    %317 = vmatprep.subr.mxu0 0.0
    %318 = vmatpush1.msra.mxu0 0.0
    %319 = vmatprep.subr.mxu0 0.0
    %320 = vmatpush1.msra.mxu0 0.0
    %321 = vmatprep.subr.mxu0 0.0
    %322 = vmatpush1.msra.mxu0 0.0
    %323 = vmatprep.subr.mxu0 0.0
    %324 = vmatpush1.msra.mxu0 0.0
    %325 = vmatprep.subr.mxu0 0.0
    %326 = vmatpush1.msra.mxu0 0.0
    %327 = vmatprep.subr.mxu0 0.0
    %328 = vmatpush1.msra.mxu0 0.0
    %329 = vmatprep.subr.mxu0 0.0
    %330 = vmatpush1.msra.mxu0 0.0
    %331 = vmatprep.subr.mxu0 0.0
    %332 = vmatpush1.msra.mxu0 0.0
    %333 = vmatprep.subr.mxu0 0.0
    %334 = vmatpush1.msra.mxu0 0.0
    %335 = vmatprep.subr.mxu0 0.0
    %336 = vmatpush1.msra.mxu0 0.0
    %337 = vmatprep.subr.mxu0 0.0
    %338 = vmatpush1.msra.mxu0 0.0
    %339 = vmatprep.subr.mxu0 0.0
    %340 = vmatpush1.msra.mxu0 0.0
    %341 = vmatprep.subr.mxu0 0.0
    %342 = vmatpush1.msra.mxu0 0.0
    %343 = vmatprep.subr.mxu0 0.0
    %344 = vmatpush1.msra.mxu0 0.0
    %345 = vmatprep.subr.mxu0 0.0
    %346 = vmatpush1.msra.mxu0 0.0
    %347 = vmatprep.subr.mxu0 0.0
    %348 = vmatpush1.msra.mxu0 0.0
    %349 = vmatprep.subr.mxu0 0.0
    %350 = vmatpush1.msra.mxu0 0.0
    %351 = vmatprep.subr.mxu0 0.0
    %352 = vmatpush1.msra.mxu0 0.0
    %353 = vmatprep.subr.mxu0 0.0
    %354 = vmatpush1.msra.mxu0 0.0
    %355 = vmatprep.subr.mxu0 0.0
    %356 = vmatpush1.msra.mxu0 0.0
    %357 = vmatprep.subr.mxu0 0.0
    %358 = vmatpush1.msra.mxu0 0.0
    %359 = vmatprep.mubr.f32.mxu0 0.0
    %360 = vmatmul.mubr.f32.gmra.mrb[0].mxu0 %v293
    %v361 = vpop.f32.mrb[0].mxu0
    %v362 = vadd.f32 0.0, %v361
    %v363 = vpop.f32.mrb[0].mxu0
    %364 = vdwg.mxu0
    %v366 = vrot.slane %v362, 6
    %v367 = vrot.slane %v362, 7
    %v370 = vadd.f32 %v101, %v366
    %v371 = vadd.f32 %v102, %v367
    %v372 = vxor.u32 %v370, 2147483648
    %v373 = vxor.u32 %v371, 2147483648
    %v374 = vmul.f32 %v372, 1.442695
    %v375 = vpow.pop %v374
    %v376 = vmul.f32 %v373, 1.442695
    %v377 = vpow.pop %v376
    %v378 = vadd.f32 %v375, 1.0
    %v379 = vadd.f32 %v377, 1.0
    %v380 = vrcp.pop %v378
    %v381 = vmul.f32 1.0, %v380
    %v382 = vrcp.pop %v379
    %v383 = vmul.f32 1.0, %v382
    %v384 = vtanh.pop %v370
    %v385 = vtanh.pop %v371
    %v388 = vrot.slane %v273, 7
    %v389 = vrot.slane %v274, 7
    %v392 = vmul.f32 %v381, %v388
    %v393 = vmul.f32 %v383, %v389
    %396 = vrot.lane.b32.xlu0 %v384, 64
    %v397 = vpop.permute.xlu0 %396
    %398 = vrot.lane.b32.xlu0 %v385, 64
    %v399 = vpop.permute.xlu0 %398
    %v402 = vmul.f32 %v381, %v397
    %v403 = vmul.f32 %v383, %v399
    %406 = vrot.lane.b32.xlu0 %v402, 32
    %v407 = vpop.permute.xlu0 %406
    %408 = vrot.lane.b32.xlu0 %v403, 32
    %v409 = vpop.permute.xlu0 %408
    %v412 = vadd.f32 %v392, %v407
    %v413 = vadd.f32 %v393, %v409
    %v414 = vtanh.pop %v412
    %v415 = vtanh.pop %v413
    %418 = vrot.lane.b32.xlu0 %v414, 64
    %v419 = vpop.permute.xlu0 %418
    %420 = vrot.lane.b32.xlu0 %v415, 64
    %v421 = vpop.permute.xlu0 %420
    %v424 = vmul.f32 %v381, %v419
    %v425 = vmul.f32 %v383, %v421
    %v428 = vrot.slane %v424, 2
    %v429 = vrot.slane %v425, 1
    %v430 = vsel %vm146, %v429, %v428
    %431 = vrot.lane.b32.xlu0 %v430, 32
    %v432 = vpop.permute.xlu0 %431
    %v433 = vsel %vm150, %v432, 0
    %435 = vmatprep.subr.mxu0 0.0
    %436 = vmatpush1.msra.mxu0 %v103
    %437 = vmatprep.subr.mxu0 0.0
    %438 = vmatpush1.msra.mxu0 %v104
    %439 = vmatprep.subr.mxu0 0.0
    %440 = vmatpush1.msra.mxu0 %v105
    %441 = vmatprep.subr.mxu0 0.0
    %442 = vmatpush1.msra.mxu0 %v106
    %443 = vmatprep.subr.mxu0 0.0
    %444 = vmatpush1.msra.mxu0 0.0
    %445 = vmatprep.subr.mxu0 0.0
    %446 = vmatpush1.msra.mxu0 0.0
    %447 = vmatprep.subr.mxu0 0.0
    %448 = vmatpush1.msra.mxu0 0.0
    %449 = vmatprep.subr.mxu0 0.0
    %450 = vmatpush1.msra.mxu0 0.0
    %451 = vmatprep.subr.mxu0 0.0
    %452 = vmatpush1.msra.mxu0 0.0
    %453 = vmatprep.subr.mxu0 0.0
    %454 = vmatpush1.msra.mxu0 0.0
    %455 = vmatprep.subr.mxu0 0.0
    %456 = vmatpush1.msra.mxu0 0.0
    %457 = vmatprep.subr.mxu0 0.0
    %458 = vmatpush1.msra.mxu0 0.0
    %459 = vmatprep.subr.mxu0 0.0
    %460 = vmatpush1.msra.mxu0 0.0
    %461 = vmatprep.subr.mxu0 0.0
    %462 = vmatpush1.msra.mxu0 0.0
    %463 = vmatprep.subr.mxu0 0.0
    %464 = vmatpush1.msra.mxu0 0.0
    %465 = vmatprep.subr.mxu0 0.0
    %466 = vmatpush1.msra.mxu0 0.0
    %467 = vmatprep.subr.mxu0 0.0
    %468 = vmatpush1.msra.mxu0 0.0
    %469 = vmatprep.subr.mxu0 0.0
    %470 = vmatpush1.msra.mxu0 0.0
    %471 = vmatprep.subr.mxu0 0.0
    %472 = vmatpush1.msra.mxu0 0.0
    %473 = vmatprep.subr.mxu0 0.0
    %474 = vmatpush1.msra.mxu0 0.0
    %475 = vmatprep.subr.mxu0 0.0
    %476 = vmatpush1.msra.mxu0 0.0
    %477 = vmatprep.subr.mxu0 0.0
    %478 = vmatpush1.msra.mxu0 0.0
    %479 = vmatprep.subr.mxu0 0.0
    %480 = vmatpush1.msra.mxu0 0.0
    %481 = vmatprep.subr.mxu0 0.0
    %482 = vmatpush1.msra.mxu0 0.0
    %483 = vmatprep.subr.mxu0 0.0
    %484 = vmatpush1.msra.mxu0 0.0
    %485 = vmatprep.subr.mxu0 0.0
    %486 = vmatpush1.msra.mxu0 0.0
    %487 = vmatprep.subr.mxu0 0.0
    %488 = vmatpush1.msra.mxu0 0.0
    %489 = vmatprep.subr.mxu0 0.0
    %490 = vmatpush1.msra.mxu0 0.0
    %491 = vmatprep.subr.mxu0 0.0
    %492 = vmatpush1.msra.mxu0 0.0
    %493 = vmatprep.subr.mxu0 0.0
    %494 = vmatpush1.msra.mxu0 0.0
    %495 = vmatprep.subr.mxu0 0.0
    %496 = vmatpush1.msra.mxu0 0.0
    %497 = vmatprep.subr.mxu0 0.0
    %498 = vmatpush1.msra.mxu0 0.0
    %499 = vmatprep.mubr.f32.mxu0 0.0
    %500 = vmatmul.mubr.f32.gmra.mrb[0].mxu0 %v433
    %v501 = vpop.f32.mrb[0].mxu0
    %v502 = vadd.f32 0.0, %v501
    %v503 = vpop.f32.mrb[0].mxu0
    %504 = vdwg.mxu0
    %v506 = vrot.slane %v502, 5
    %v507 = vrot.slane %v502, 6
    %v510 = vadd.f32 %v101, %v506
    %v511 = vadd.f32 %v102, %v507
    %v512 = vxor.u32 %v510, 2147483648
    %v513 = vxor.u32 %v511, 2147483648
    %v514 = vmul.f32 %v512, 1.442695
    %v515 = vpow.pop %v514
    %v516 = vmul.f32 %v513, 1.442695
    %v517 = vpow.pop %v516
    %v518 = vadd.f32 %v515, 1.0
    %v519 = vadd.f32 %v517, 1.0
    %v520 = vrcp.pop %v518
    %v521 = vmul.f32 1.0, %v520
    %v522 = vrcp.pop %v519
    %v523 = vmul.f32 1.0, %v522
    %v524 = vtanh.pop %v510
    %v525 = vtanh.pop %v511
    %v528 = vrot.slane %v412, 7
    %v529 = vrot.slane %v413, 7
    %v532 = vmul.f32 %v521, %v528
    %v533 = vmul.f32 %v523, %v529
    %536 = vrot.lane.b32.xlu0 %v524, 64
    %v537 = vpop.permute.xlu0 %536
    %538 = vrot.lane.b32.xlu0 %v525, 64
    %v539 = vpop.permute.xlu0 %538
    %v542 = vmul.f32 %v521, %v537
    %v543 = vmul.f32 %v523, %v539
    %546 = vrot.lane.b32.xlu0 %v542, 32
    %v547 = vpop.permute.xlu0 %546
    %548 = vrot.lane.b32.xlu0 %v543, 32
    %v549 = vpop.permute.xlu0 %548
    %v552 = vadd.f32 %v532, %v547
    %v553 = vadd.f32 %v533, %v549
    %v554 = vtanh.pop %v552
    %v555 = vtanh.pop %v553
    %558 = vrot.lane.b32.xlu0 %v554, 64
    %v559 = vpop.permute.xlu0 %558
    %560 = vrot.lane.b32.xlu0 %v555, 64
    %v561 = vpop.permute.xlu0 %560
    %v564 = vmul.f32 %v521, %v559
    %v565 = vmul.f32 %v523, %v561
    %v568 = vrot.slane %v564, 3
    %v569 = vrot.slane %v565, 2
    %v570 = vsel %vm146, %v569, %v568
    %571 = vrot.lane.b32.xlu0 %v570, 32
    %v572 = vpop.permute.xlu0 %571
    %v573 = vsel %vm150, %v572, 0
    %575 = vmatprep.subr.mxu0 0.0
    %576 = vmatpush1.msra.mxu0 %v103
    %577 = vmatprep.subr.mxu0 0.0
    %578 = vmatpush1.msra.mxu0 %v104
    %579 = vmatprep.subr.mxu0 0.0
    %580 = vmatpush1.msra.mxu0 %v105
    %581 = vmatprep.subr.mxu0 0.0
    %582 = vmatpush1.msra.mxu0 %v106
    %583 = vmatprep.subr.mxu0 0.0
    %584 = vmatpush1.msra.mxu0 0.0
    %585 = vmatprep.subr.mxu0 0.0
    %586 = vmatpush1.msra.mxu0 0.0
    %587 = vmatprep.subr.mxu0 0.0
    %588 = vmatpush1.msra.mxu0 0.0
    %589 = vmatprep.subr.mxu0 0.0
    %590 = vmatpush1.msra.mxu0 0.0
    %591 = vmatprep.subr.mxu0 0.0
    %592 = vmatpush1.msra.mxu0 0.0
    %593 = vmatprep.subr.mxu0 0.0
    %594 = vmatpush1.msra.mxu0 0.0
    %595 = vmatprep.subr.mxu0 0.0
    %596 = vmatpush1.msra.mxu0 0.0
    %597 = vmatprep.subr.mxu0 0.0
    %598 = vmatpush1.msra.mxu0 0.0
    %599 = vmatprep.subr.mxu0 0.0
    %600 = vmatpush1.msra.mxu0 0.0
    %601 = vmatprep.subr.mxu0 0.0
    %602 = vmatpush1.msra.mxu0 0.0
    %603 = vmatprep.subr.mxu0 0.0
    %604 = vmatpush1.msra.mxu0 0.0
    %605 = vmatprep.subr.mxu0 0.0
    %606 = vmatpush1.msra.mxu0 0.0
    %607 = vmatprep.subr.mxu0 0.0
    %608 = vmatpush1.msra.mxu0 0.0
    %609 = vmatprep.subr.mxu0 0.0
    %610 = vmatpush1.msra.mxu0 0.0
    %611 = vmatprep.subr.mxu0 0.0
    %612 = vmatpush1.msra.mxu0 0.0
    %613 = vmatprep.subr.mxu0 0.0
    %614 = vmatpush1.msra.mxu0 0.0
    %615 = vmatprep.subr.mxu0 0.0
    %616 = vmatpush1.msra.mxu0 0.0
    %617 = vmatprep.subr.mxu0 0.0
    %618 = vmatpush1.msra.mxu0 0.0
    %619 = vmatprep.subr.mxu0 0.0
    %620 = vmatpush1.msra.mxu0 0.0
    %621 = vmatprep.subr.mxu0 0.0
    %622 = vmatpush1.msra.mxu0 0.0
    %623 = vmatprep.subr.mxu0 0.0
    %624 = vmatpush1.msra.mxu0 0.0
    %625 = vmatprep.subr.mxu0 0.0
    %626 = vmatpush1.msra.mxu0 0.0
    %627 = vmatprep.subr.mxu0 0.0
    %628 = vmatpush1.msra.mxu0 0.0
    %629 = vmatprep.subr.mxu0 0.0
    %630 = vmatpush1.msra.mxu0 0.0
    %631 = vmatprep.subr.mxu0 0.0
    %632 = vmatpush1.msra.mxu0 0.0
    %633 = vmatprep.subr.mxu0 0.0
    %634 = vmatpush1.msra.mxu0 0.0
    %635 = vmatprep.subr.mxu0 0.0
    %636 = vmatpush1.msra.mxu0 0.0
    %637 = vmatprep.subr.mxu0 0.0
    %638 = vmatpush1.msra.mxu0 0.0
    %639 = vmatprep.mubr.f32.mxu0 0.0
    %640 = vmatmul.mubr.f32.gmra.mrb[0].mxu0 %v573
    %v641 = vpop.f32.mrb[0].mxu0
    %v642 = vadd.f32 0.0, %v641
    %v643 = vpop.f32.mrb[0].mxu0
    %644 = vdwg.mxu0
    %v646 = vrot.slane %v642, 4
    %v647 = vrot.slane %v642, 5
    %v650 = vadd.f32 %v101, %v646
    %v651 = vadd.f32 %v102, %v647
    %v652 = vxor.u32 %v650, 2147483648
    %v653 = vxor.u32 %v651, 2147483648
    %v654 = vmul.f32 %v652, 1.442695
    %v655 = vpow.pop %v654
    %v656 = vmul.f32 %v653, 1.442695
    %v657 = vpow.pop %v656
    %v658 = vadd.f32 %v655, 1.0
    %v659 = vadd.f32 %v657, 1.0
    %v660 = vrcp.pop %v658
    %v661 = vmul.f32 1.0, %v660
    %v662 = vrcp.pop %v659
    %v663 = vmul.f32 1.0, %v662
    %v664 = vtanh.pop %v650
    %v665 = vtanh.pop %v651
    %v668 = vrot.slane %v552, 7
    %v669 = vrot.slane %v553, 7
    %v672 = vmul.f32 %v661, %v668
    %v673 = vmul.f32 %v663, %v669
    %676 = vrot.lane.b32.xlu0 %v664, 64
    %v677 = vpop.permute.xlu0 %676
    %678 = vrot.lane.b32.xlu0 %v665, 64
    %v679 = vpop.permute.xlu0 %678
    %v682 = vmul.f32 %v661, %v677
    %v683 = vmul.f32 %v663, %v679
    %686 = vrot.lane.b32.xlu0 %v682, 32
    %v687 = vpop.permute.xlu0 %686
    %688 = vrot.lane.b32.xlu0 %v683, 32
    %v689 = vpop.permute.xlu0 %688
    %v692 = vadd.f32 %v672, %v687
    %v693 = vadd.f32 %v673, %v689
    %v694 = vtanh.pop %v692
    %v695 = vtanh.pop %v693
    %698 = vrot.lane.b32.xlu0 %v694, 64
    %v699 = vpop.permute.xlu0 %698
    %700 = vrot.lane.b32.xlu0 %v695, 64
    %v701 = vpop.permute.xlu0 %700
    %v704 = vmul.f32 %v661, %v699
    %v705 = vmul.f32 %v663, %v701
    %v708 = vrot.slane %v704, 4
    %v709 = vrot.slane %v705, 3
    %v710 = vsel %vm146, %v709, %v708
    %711 = vrot.lane.b32.xlu0 %v710, 32
    %v712 = vpop.permute.xlu0 %711
    %v713 = vsel %vm150, %v712, 0
    %715 = vmatprep.subr.mxu0 0.0
    %716 = vmatpush1.msra.mxu0 %v103
    %717 = vmatprep.subr.mxu0 0.0
    %718 = vmatpush1.msra.mxu0 %v104
    %719 = vmatprep.subr.mxu0 0.0
    %720 = vmatpush1.msra.mxu0 %v105
    %721 = vmatprep.subr.mxu0 0.0
    %722 = vmatpush1.msra.mxu0 %v106
    %723 = vmatprep.subr.mxu0 0.0
    %724 = vmatpush1.msra.mxu0 0.0
    %725 = vmatprep.subr.mxu0 0.0
    %726 = vmatpush1.msra.mxu0 0.0
    %727 = vmatprep.subr.mxu0 0.0
    %728 = vmatpush1.msra.mxu0 0.0
    %729 = vmatprep.subr.mxu0 0.0
    %730 = vmatpush1.msra.mxu0 0.0
    %731 = vmatprep.subr.mxu0 0.0
    %732 = vmatpush1.msra.mxu0 0.0
    %733 = vmatprep.subr.mxu0 0.0
    %734 = vmatpush1.msra.mxu0 0.0
    %735 = vmatprep.subr.mxu0 0.0
    %736 = vmatpush1.msra.mxu0 0.0
    %737 = vmatprep.subr.mxu0 0.0
    %738 = vmatpush1.msra.mxu0 0.0
    %739 = vmatprep.subr.mxu0 0.0
    %740 = vmatpush1.msra.mxu0 0.0
    %741 = vmatprep.subr.mxu0 0.0
    %742 = vmatpush1.msra.mxu0 0.0
    %743 = vmatprep.subr.mxu0 0.0
    %744 = vmatpush1.msra.mxu0 0.0
    %745 = vmatprep.subr.mxu0 0.0
    %746 = vmatpush1.msra.mxu0 0.0
    %747 = vmatprep.subr.mxu0 0.0
    %748 = vmatpush1.msra.mxu0 0.0
    %749 = vmatprep.subr.mxu0 0.0
    %750 = vmatpush1.msra.mxu0 0.0
    %751 = vmatprep.subr.mxu0 0.0
    %752 = vmatpush1.msra.mxu0 0.0
    %753 = vmatprep.subr.mxu0 0.0
    %754 = vmatpush1.msra.mxu0 0.0
    %755 = vmatprep.subr.mxu0 0.0
    %756 = vmatpush1.msra.mxu0 0.0
    %757 = vmatprep.subr.mxu0 0.0
    %758 = vmatpush1.msra.mxu0 0.0
    %759 = vmatprep.subr.mxu0 0.0
    %760 = vmatpush1.msra.mxu0 0.0
    %761 = vmatprep.subr.mxu0 0.0
    %762 = vmatpush1.msra.mxu0 0.0
    %763 = vmatprep.subr.mxu0 0.0
    %764 = vmatpush1.msra.mxu0 0.0
    %765 = vmatprep.subr.mxu0 0.0
    %766 = vmatpush1.msra.mxu0 0.0
    %767 = vmatprep.subr.mxu0 0.0
    %768 = vmatpush1.msra.mxu0 0.0
    %769 = vmatprep.subr.mxu0 0.0
    %770 = vmatpush1.msra.mxu0 0.0
    %771 = vmatprep.subr.mxu0 0.0
    %772 = vmatpush1.msra.mxu0 0.0
    %773 = vmatprep.subr.mxu0 0.0
    %774 = vmatpush1.msra.mxu0 0.0
    %775 = vmatprep.subr.mxu0 0.0
    %776 = vmatpush1.msra.mxu0 0.0
    %777 = vmatprep.subr.mxu0 0.0
    %778 = vmatpush1.msra.mxu0 0.0
    %779 = vmatprep.mubr.f32.mxu0 0.0
    %780 = vmatmul.mubr.f32.gmra.mrb[0].mxu0 %v713
    %v781 = vpop.f32.mrb[0].mxu0
    %v782 = vadd.f32 0.0, %v781
    %v783 = vpop.f32.mrb[0].mxu0
    %784 = vdwg.mxu0
    %v786 = vrot.slane %v782, 3
    %v787 = vrot.slane %v782, 4
    %v790 = vadd.f32 %v101, %v786
    %v791 = vadd.f32 %v102, %v787
    %v792 = vxor.u32 %v790, 2147483648
    %v793 = vxor.u32 %v791, 2147483648
    %v794 = vmul.f32 %v792, 1.442695
    %v795 = vpow.pop %v794
    %v796 = vmul.f32 %v793, 1.442695
    %v797 = vpow.pop %v796
    %v798 = vadd.f32 %v795, 1.0
    %v799 = vadd.f32 %v797, 1.0
    %v800 = vrcp.pop %v798
    %v801 = vmul.f32 1.0, %v800
    %v802 = vrcp.pop %v799
    %v803 = vmul.f32 1.0, %v802
    %v804 = vtanh.pop %v790
    %v805 = vtanh.pop %v791
    %v808 = vrot.slane %v692, 7
    %v809 = vrot.slane %v693, 7
    %v812 = vmul.f32 %v801, %v808
    %v813 = vmul.f32 %v803, %v809
    %816 = vrot.lane.b32.xlu0 %v804, 64
    %v817 = vpop.permute.xlu0 %816
    %818 = vrot.lane.b32.xlu0 %v805, 64
    %v819 = vpop.permute.xlu0 %818
    %v822 = vmul.f32 %v801, %v817
    %v823 = vmul.f32 %v803, %v819
    %826 = vrot.lane.b32.xlu0 %v822, 32
    %v827 = vpop.permute.xlu0 %826
    %828 = vrot.lane.b32.xlu0 %v823, 32
    %v829 = vpop.permute.xlu0 %828
    %v832 = vadd.f32 %v812, %v827
    %v833 = vadd.f32 %v813, %v829
    %v834 = vtanh.pop %v832
    %v835 = vtanh.pop %v833
    %838 = vrot.lane.b32.xlu0 %v834, 64
    %v839 = vpop.permute.xlu0 %838
    %840 = vrot.lane.b32.xlu0 %v835, 64
    %v841 = vpop.permute.xlu0 %840
    %v844 = vmul.f32 %v801, %v839
    %v845 = vmul.f32 %v803, %v841
    %v848 = vrot.slane %v844, 5
    %v849 = vrot.slane %v845, 4
    %v850 = vsel %vm146, %v849, %v848
    %851 = vrot.lane.b32.xlu0 %v850, 32
    %v852 = vpop.permute.xlu0 %851
    %v853 = vsel %vm150, %v852, 0
    %855 = vmatprep.subr.mxu0 0.0
    %856 = vmatpush1.msra.mxu0 %v103
    %857 = vmatprep.subr.mxu0 0.0
    %858 = vmatpush1.msra.mxu0 %v104
    %859 = vmatprep.subr.mxu0 0.0
    %860 = vmatpush1.msra.mxu0 %v105
    %861 = vmatprep.subr.mxu0 0.0
    %862 = vmatpush1.msra.mxu0 %v106
    %863 = vmatprep.subr.mxu0 0.0
    %864 = vmatpush1.msra.mxu0 0.0
    %865 = vmatprep.subr.mxu0 0.0
    %866 = vmatpush1.msra.mxu0 0.0
    %867 = vmatprep.subr.mxu0 0.0
    %868 = vmatpush1.msra.mxu0 0.0
    %869 = vmatprep.subr.mxu0 0.0
    %870 = vmatpush1.msra.mxu0 0.0
    %871 = vmatprep.subr.mxu0 0.0
    %872 = vmatpush1.msra.mxu0 0.0
    %873 = vmatprep.subr.mxu0 0.0
    %874 = vmatpush1.msra.mxu0 0.0
    %875 = vmatprep.subr.mxu0 0.0
    %876 = vmatpush1.msra.mxu0 0.0
    %877 = vmatprep.subr.mxu0 0.0
    %878 = vmatpush1.msra.mxu0 0.0
    %879 = vmatprep.subr.mxu0 0.0
    %880 = vmatpush1.msra.mxu0 0.0
    %881 = vmatprep.subr.mxu0 0.0
    %882 = vmatpush1.msra.mxu0 0.0
    %883 = vmatprep.subr.mxu0 0.0
    %884 = vmatpush1.msra.mxu0 0.0
    %885 = vmatprep.subr.mxu0 0.0
    %886 = vmatpush1.msra.mxu0 0.0
    %887 = vmatprep.subr.mxu0 0.0
    %888 = vmatpush1.msra.mxu0 0.0
    %889 = vmatprep.subr.mxu0 0.0
    %890 = vmatpush1.msra.mxu0 0.0
    %891 = vmatprep.subr.mxu0 0.0
    %892 = vmatpush1.msra.mxu0 0.0
    %893 = vmatprep.subr.mxu0 0.0
    %894 = vmatpush1.msra.mxu0 0.0
    %895 = vmatprep.subr.mxu0 0.0
    %896 = vmatpush1.msra.mxu0 0.0
    %897 = vmatprep.subr.mxu0 0.0
    %898 = vmatpush1.msra.mxu0 0.0
    %899 = vmatprep.subr.mxu0 0.0
    %900 = vmatpush1.msra.mxu0 0.0
    %901 = vmatprep.subr.mxu0 0.0
    %902 = vmatpush1.msra.mxu0 0.0
    %903 = vmatprep.subr.mxu0 0.0
    %904 = vmatpush1.msra.mxu0 0.0
    %905 = vmatprep.subr.mxu0 0.0
    %906 = vmatpush1.msra.mxu0 0.0
    %907 = vmatprep.subr.mxu0 0.0
    %908 = vmatpush1.msra.mxu0 0.0
    %909 = vmatprep.subr.mxu0 0.0
    %910 = vmatpush1.msra.mxu0 0.0
    %911 = vmatprep.subr.mxu0 0.0
    %912 = vmatpush1.msra.mxu0 0.0
    %913 = vmatprep.subr.mxu0 0.0
    %914 = vmatpush1.msra.mxu0 0.0
    %915 = vmatprep.subr.mxu0 0.0
    %916 = vmatpush1.msra.mxu0 0.0
    %917 = vmatprep.subr.mxu0 0.0
    %918 = vmatpush1.msra.mxu0 0.0
    %919 = vmatprep.mubr.f32.mxu0 0.0
    %920 = vmatmul.mubr.f32.gmra.mrb[0].mxu0 %v853
    %v921 = vpop.f32.mrb[0].mxu0
    %v922 = vadd.f32 0.0, %v921
    %v923 = vpop.f32.mrb[0].mxu0
    %924 = vdwg.mxu0
    %v926 = vrot.slane %v922, 2
    %v927 = vrot.slane %v922, 3
    %v930 = vadd.f32 %v101, %v926
    %v931 = vadd.f32 %v102, %v927
    %v932 = vxor.u32 %v930, 2147483648
    %v933 = vxor.u32 %v931, 2147483648
    %v934 = vmul.f32 %v932, 1.442695
    %v935 = vpow.pop %v934
    %v936 = vmul.f32 %v933, 1.442695
    %v937 = vpow.pop %v936
    %v938 = vadd.f32 %v935, 1.0
    %v939 = vadd.f32 %v937, 1.0
    %v940 = vrcp.pop %v938
    %v941 = vmul.f32 1.0, %v940
    %v942 = vrcp.pop %v939
    %v943 = vmul.f32 1.0, %v942
    %v944 = vtanh.pop %v930
    %v945 = vtanh.pop %v931
    %v948 = vrot.slane %v832, 7
    %v949 = vrot.slane %v833, 7
    %v952 = vmul.f32 %v941, %v948
    %v953 = vmul.f32 %v943, %v949
    %956 = vrot.lane.b32.xlu0 %v944, 64
    %v957 = vpop.permute.xlu0 %956
    %958 = vrot.lane.b32.xlu0 %v945, 64
    %v959 = vpop.permute.xlu0 %958
    %v962 = vmul.f32 %v941, %v957
    %v963 = vmul.f32 %v943, %v959
    %966 = vrot.lane.b32.xlu0 %v962, 32
    %v967 = vpop.permute.xlu0 %966
    %968 = vrot.lane.b32.xlu0 %v963, 32
    %v969 = vpop.permute.xlu0 %968
    %v972 = vadd.f32 %v952, %v967
    %v973 = vadd.f32 %v953, %v969
    %v974 = vtanh.pop %v972
    %v975 = vtanh.pop %v973
    %978 = vrot.lane.b32.xlu0 %v974, 64
    %v979 = vpop.permute.xlu0 %978
    %980 = vrot.lane.b32.xlu0 %v975, 64
    %v981 = vpop.permute.xlu0 %980
    %v984 = vmul.f32 %v941, %v979
    %v985 = vmul.f32 %v943, %v981
    %v988 = vrot.slane %v984, 6
    %v989 = vrot.slane %v985, 5
    %v990 = vsel %vm146, %v989, %v988
    %991 = vrot.lane.b32.xlu0 %v990, 32
    %v992 = vpop.permute.xlu0 %991
    %v993 = vsel %vm150, %v992, 0
    %995 = vmatprep.subr.mxu0 0.0
    %996 = vmatpush1.msra.mxu0 %v103
    %997 = vmatprep.subr.mxu0 0.0
    %998 = vmatpush1.msra.mxu0 %v104
    %999 = vmatprep.subr.mxu0 0.0
    %1000 = vmatpush1.msra.mxu0 %v105
    %1001 = vmatprep.subr.mxu0 0.0
    %1002 = vmatpush1.msra.mxu0 %v106
    %1003 = vmatprep.subr.mxu0 0.0
    %1004 = vmatpush1.msra.mxu0 0.0
    %1005 = vmatprep.subr.mxu0 0.0
    %1006 = vmatpush1.msra.mxu0 0.0
    %1007 = vmatprep.subr.mxu0 0.0
    %1008 = vmatpush1.msra.mxu0 0.0
    %1009 = vmatprep.subr.mxu0 0.0
    %1010 = vmatpush1.msra.mxu0 0.0
    %1011 = vmatprep.subr.mxu0 0.0
    %1012 = vmatpush1.msra.mxu0 0.0
    %1013 = vmatprep.subr.mxu0 0.0
    %1014 = vmatpush1.msra.mxu0 0.0
    %1015 = vmatprep.subr.mxu0 0.0
    %1016 = vmatpush1.msra.mxu0 0.0
    %1017 = vmatprep.subr.mxu0 0.0
    %1018 = vmatpush1.msra.mxu0 0.0
    %1019 = vmatprep.subr.mxu0 0.0
    %1020 = vmatpush1.msra.mxu0 0.0
    %1021 = vmatprep.subr.mxu0 0.0
    %1022 = vmatpush1.msra.mxu0 0.0
    %1023 = vmatprep.subr.mxu0 0.0
    %1024 = vmatpush1.msra.mxu0 0.0
    %1025 = vmatprep.subr.mxu0 0.0
    %1026 = vmatpush1.msra.mxu0 0.0
    %1027 = vmatprep.subr.mxu0 0.0
    %1028 = vmatpush1.msra.mxu0 0.0
    %1029 = vmatprep.subr.mxu0 0.0
    %1030 = vmatpush1.msra.mxu0 0.0
    %1031 = vmatprep.subr.mxu0 0.0
    %1032 = vmatpush1.msra.mxu0 0.0
    %1033 = vmatprep.subr.mxu0 0.0
    %1034 = vmatpush1.msra.mxu0 0.0
    %1035 = vmatprep.subr.mxu0 0.0
    %1036 = vmatpush1.msra.mxu0 0.0
    %1037 = vmatprep.subr.mxu0 0.0
    %1038 = vmatpush1.msra.mxu0 0.0
    %1039 = vmatprep.subr.mxu0 0.0
    %1040 = vmatpush1.msra.mxu0 0.0
    %1041 = vmatprep.subr.mxu0 0.0
    %1042 = vmatpush1.msra.mxu0 0.0
    %1043 = vmatprep.subr.mxu0 0.0
    %1044 = vmatpush1.msra.mxu0 0.0
    %1045 = vmatprep.subr.mxu0 0.0
    %1046 = vmatpush1.msra.mxu0 0.0
    %1047 = vmatprep.subr.mxu0 0.0
    %1048 = vmatpush1.msra.mxu0 0.0
    %1049 = vmatprep.subr.mxu0 0.0
    %1050 = vmatpush1.msra.mxu0 0.0
    %1051 = vmatprep.subr.mxu0 0.0
    %1052 = vmatpush1.msra.mxu0 0.0
    %1053 = vmatprep.subr.mxu0 0.0
    %1054 = vmatpush1.msra.mxu0 0.0
    %1055 = vmatprep.subr.mxu0 0.0
    %1056 = vmatpush1.msra.mxu0 0.0
    %1057 = vmatprep.subr.mxu0 0.0
    %1058 = vmatpush1.msra.mxu0 0.0
    %1059 = vmatprep.mubr.f32.mxu0 0.0
    %1060 = vmatmul.mubr.f32.gmra.mrb[0].mxu0 %v993
    %v1061 = vpop.f32.mrb[0].mxu0
    %v1062 = vadd.f32 0.0, %v1061
    %v1063 = vpop.f32.mrb[0].mxu0
    %1064 = vdwg.mxu0
    %v1066 = vrot.slane %v1062, 1
    %v1067 = vrot.slane %v1062, 2
    %v1070 = vadd.f32 %v101, %v1066
    %v1071 = vadd.f32 %v102, %v1067
    %v1072 = vxor.u32 %v1070, 2147483648
    %v1073 = vxor.u32 %v1071, 2147483648
    %v1074 = vmul.f32 %v1072, 1.442695
    %v1075 = vpow.pop %v1074
    %v1076 = vmul.f32 %v1073, 1.442695
    %v1077 = vpow.pop %v1076
    %v1078 = vadd.f32 %v1075, 1.0
    %v1079 = vadd.f32 %v1077, 1.0
    %v1080 = vrcp.pop %v1078
    %v1081 = vmul.f32 1.0, %v1080
    %v1082 = vrcp.pop %v1079
    %v1083 = vmul.f32 1.0, %v1082
    %v1084 = vtanh.pop %v1070
    %v1085 = vtanh.pop %v1071
    %v1088 = vrot.slane %v972, 7
    %v1089 = vrot.slane %v973, 7
    %v1092 = vmul.f32 %v1081, %v1088
    %v1093 = vmul.f32 %v1083, %v1089
    %1096 = vrot.lane.b32.xlu0 %v1084, 64
    %v1097 = vpop.permute.xlu0 %1096
    %1098 = vrot.lane.b32.xlu0 %v1085, 64
    %v1099 = vpop.permute.xlu0 %1098
    %v1102 = vmul.f32 %v1081, %v1097
    %v1103 = vmul.f32 %v1083, %v1099
    %1106 = vrot.lane.b32.xlu0 %v1102, 32
    %v1107 = vpop.permute.xlu0 %1106
    %1108 = vrot.lane.b32.xlu0 %v1103, 32
    %v1109 = vpop.permute.xlu0 %1108
    %v1112 = vadd.f32 %v1092, %v1107
    %v1113 = vadd.f32 %v1093, %v1109
    %v1114 = vtanh.pop %v1112
    %v1115 = vtanh.pop %v1113
    %1118 = vrot.lane.b32.xlu0 %v1114, 64
    %v1119 = vpop.permute.xlu0 %1118
    %1120 = vrot.lane.b32.xlu0 %v1115, 64
    %v1121 = vpop.permute.xlu0 %1120
    %v1124 = vmul.f32 %v1081, %v1119
    %v1125 = vmul.f32 %v1083, %v1121
    %v1126 = vld [vmem:[#allocation2 + $0x28] sm:$0xff]
    %v1127 = vld [vmem:[#allocation2 + $0x30] sm:$0xff]
    %v1128 = vld [vmem:[#allocation2 + $0x38] sm:$0xff]
    %v1129 = vld [vmem:[#allocation2 + $0x40] sm:$0xff]
    %v1130 = vld [vmem:[#allocation2 + $0x48] sm:$0x1]
    %v1131 = vlaneseq
    %v1132 = vshrl.u32 %v1131, 7
    %v1133 = vsub.s32 0, %v1132
    %v1134 = vrot.slane %v1130, %v1133
    %v1137 = vrot.slane %v1124, 7
    %v1138 = vrot.slane %v1125, 6
    %v1139 = vsel %vm146, %v1138, %v1137
    %1140 = vrot.lane.b32.xlu0 %v1139, 32
    %v1141 = vpop.permute.xlu0 %1140
    %v1142 = vsel %vm150, %v1141, 0
    %1144 = vmatprep.subr.mxu0 0.0
    %1145 = vmatpush1.msra.mxu0 %v1126
    %1146 = vmatprep.subr.mxu0 0.0
    %1147 = vmatpush1.msra.mxu0 %v1127
    %1148 = vmatprep.subr.mxu0 0.0
    %1149 = vmatpush1.msra.mxu0 %v1128
    %1150 = vmatprep.subr.mxu0 0.0
    %1151 = vmatpush1.msra.mxu0 %v1129
    %1152 = vmatprep.subr.mxu0 0.0
    %1153 = vmatpush1.msra.mxu0 0.0
    %1154 = vmatprep.subr.mxu0 0.0
    %1155 = vmatpush1.msra.mxu0 0.0
    %1156 = vmatprep.subr.mxu0 0.0
    %1157 = vmatpush1.msra.mxu0 0.0
    %1158 = vmatprep.subr.mxu0 0.0
    %1159 = vmatpush1.msra.mxu0 0.0
    %1160 = vmatprep.subr.mxu0 0.0
    %1161 = vmatpush1.msra.mxu0 0.0
    %1162 = vmatprep.subr.mxu0 0.0
    %1163 = vmatpush1.msra.mxu0 0.0
    %1164 = vmatprep.subr.mxu0 0.0
    %1165 = vmatpush1.msra.mxu0 0.0
    %1166 = vmatprep.subr.mxu0 0.0
    %1167 = vmatpush1.msra.mxu0 0.0
    %1168 = vmatprep.subr.mxu0 0.0
    %1169 = vmatpush1.msra.mxu0 0.0
    %1170 = vmatprep.subr.mxu0 0.0
    %1171 = vmatpush1.msra.mxu0 0.0
    %1172 = vmatprep.subr.mxu0 0.0
    %1173 = vmatpush1.msra.mxu0 0.0
    %1174 = vmatprep.subr.mxu0 0.0
    %1175 = vmatpush1.msra.mxu0 0.0
    %1176 = vmatprep.subr.mxu0 0.0
    %1177 = vmatpush1.msra.mxu0 0.0
    %1178 = vmatprep.subr.mxu0 0.0
    %1179 = vmatpush1.msra.mxu0 0.0
    %1180 = vmatprep.subr.mxu0 0.0
    %1181 = vmatpush1.msra.mxu0 0.0
    %1182 = vmatprep.subr.mxu0 0.0
    %1183 = vmatpush1.msra.mxu0 0.0
    %1184 = vmatprep.subr.mxu0 0.0
    %1185 = vmatpush1.msra.mxu0 0.0
    %1186 = vmatprep.subr.mxu0 0.0
    %1187 = vmatpush1.msra.mxu0 0.0
    %1188 = vmatprep.subr.mxu0 0.0
    %1189 = vmatpush1.msra.mxu0 0.0
    %1190 = vmatprep.subr.mxu0 0.0
    %1191 = vmatpush1.msra.mxu0 0.0
    %1192 = vmatprep.subr.mxu0 0.0
    %1193 = vmatpush1.msra.mxu0 0.0
    %1194 = vmatprep.subr.mxu0 0.0
    %1195 = vmatpush1.msra.mxu0 0.0
    %1196 = vmatprep.subr.mxu0 0.0
    %1197 = vmatpush1.msra.mxu0 0.0
    %1198 = vmatprep.subr.mxu0 0.0
    %1199 = vmatpush1.msra.mxu0 0.0
    %1200 = vmatprep.subr.mxu0 0.0
    %1201 = vmatpush1.msra.mxu0 0.0
    %1202 = vmatprep.subr.mxu0 0.0
    %1203 = vmatpush1.msra.mxu0 0.0
    %1204 = vmatprep.subr.mxu0 0.0
    %1205 = vmatpush1.msra.mxu0 0.0
    %1206 = vmatprep.subr.mxu0 0.0
    %1207 = vmatpush1.msra.mxu0 0.0
    %1208 = vmatprep.mubr.f32.mxu0 0.0
    %1209 = vmatmul.mubr.f32.gmra.mrb[0].mxu0 %v1142
    %v1210 = vpop.f32.mrb[0].mxu0
    %v1211 = vadd.f32 %v1134, %v1210
    %v1212 = vpop.f32.mrb[0].mxu0
    %1213 = vdwg.mxu0
    %vm1214 = vcmask 1041408
    %v1215 = vsel %vm1214, %v1211, -inf
    %1216 = vmax.xlane.f32.xlu0 %v1215
    %v1217 = vpop.xlane.xlu0 %1216
    %v1218 = vsub.f32 %v1211, %v1217
    %v1219 = vmul.f32 %v1218, 1.442695
    %v1220 = vpow.pop %v1219
    %v1221 = vsel %vm1214, %v1220, 0.0
    %1222 = vadd.xlane.f32.xlu0 %v1221
    %v1223 = vpop.xlane.xlu0 %1222
    %v1224 = vrcp.pop %v1223
    %v1225 = vmul.f32 %v1220, %v1224
    %1226 = vst [vmem:[#allocation5] sm:$0x3] %v1225
    // Predicated region
    $region14: #{meta_learner_forward.1} parent=1 // pred_check
      _
    $region15: #{meta_learner_forward.1} parent=1 // pred_check_branch
      %1228 = sbr.rel (0) target = $region17
    $region16: #{meta_learner_forward.1} parent=1 // pred_region
      %s1230 = ssub.s32 32, 32
      %1231 = vsyncadd [#allocation4], %s1230
      %s1233 = sshll.u32 [#allocation5], 4
      %s1234 = int_to_ptr.vmem [resolvable:$true] %s1233
      %1236 = dma.vmem_to_hbm [thread:$0]  %s1234, 32, %s2, [#allocation4]
    $region17: #{meta_learner_forward.1} parent=1 // pred_fallthru
      _
    // Predicated region
    $region18: #{meta_learner_forward.1} parent=1 // pred_check
      _
    $region19: #{meta_learner_forward.1} parent=1 // pred_check_branch
      %1238 = sbr.rel (0) target = $region21
    $region20: #{meta_learner_forward.1} parent=1 // pred_region
      %1239 = dma.done [#allocation4], 32
    $region21: #{meta_learner_forward.1} parent=1 // pred_fallthru
      _
    %1240 = vsyncpa [#allocation3], 1
    %1241 = vsyncpa [#allocation4], 1

</llo_original>
